<compile_context>
chip_gen: v5e
topology: v5e:2x2
jax: 0.10.0
libtpu: 0.0.40
codegen_flags: <defaults>
</compile_context>

<pallas_src>
import math

import jax
import jax.numpy as jnp
from jax.experimental import pallas as pl
from jax.experimental.pallas import tpu as pltpu


# ---------------------------------------------------------------------------
# Kernel: the full ensemble MLP as three packed matmuls on one batch tile.
# ---------------------------------------------------------------------------
def _ensemble_mlp_kernel(x_ref, w1_ref, b1_ref, w2_ref, b2_ref, w3_ref, b3_ref,
                         o_ref):
    # x_ref : (TILE_B, S)
    # w1_ref: (S, E_pad*H)          ensemble packed along lanes
    # b1_ref: (1, E_pad*H)
    # w2_ref: (E_pad*H, E_pad*H)    block-diagonal (one H x H block per member)
    # b2_ref: (1, E_pad*H)
    # w3_ref: (E_pad*H, E_pad)      block-diagonal (one H x 1 block per member)
    # b3_ref: (1, E_pad)
    # o_ref : (TILE_B, E_pad)       lane-dense output tile
    x = x_ref[...].astype(w1_ref.dtype)

    h1 = jnp.dot(x, w1_ref[...], preferred_element_type=jnp.float32)
    h1 = jnp.maximum(h1 + b1_ref[...], 0.0)                      # ReLU (f32)

    h2 = jnp.dot(h1.astype(w2_ref.dtype), w2_ref[...],
                 preferred_element_type=jnp.float32)
    h2 = jnp.maximum(h2 + b2_ref[...], 0.0)                      # ReLU (f32)

    out = jnp.dot(h2.astype(w3_ref.dtype), w3_ref[...],
                  preferred_element_type=jnp.float32)
    o_ref[...] = (out + b3_ref[...]).astype(o_ref.dtype)


# ---------------------------------------------------------------------------
# Helpers
# ---------------------------------------------------------------------------
def _round_up(x, m):
    return ((x + m - 1) // m) * m


def _lcm(a, b):
    return a * b // math.gcd(a, b)


# ---------------------------------------------------------------------------
# Wrapper: batch-tiled pallas_call, weights resident via constant index_maps.
# ---------------------------------------------------------------------------
def reward_model_ensemble_forward(state, packed_params, n_ensemble, *,
                                  tile_b=None):
    """state: [B, state_dim] f32, packed_params from pack_params().
    Returns [B, n_ensemble] f32 (== torch.stack(..., dim=1).squeeze(2))."""
    w1p, b1p, w2p, b2p, w3p, b3p = packed_params
    B, S = state.shape
    EH = w1p.shape[1]          # padded E*H (multiple of 128)
    E_pad = w3p.shape[1]       # padded ensemble width

    # Batch tile: whole (sublane-rounded) batch when small; 256-row tiles for
    # pipelining when large.
    if tile_b is None:
        tile_b = min(_round_up(B, 8), 256)
    B_pad = _round_up(B, tile_b)
    if B_pad != B:
        state = jnp.concatenate(
            [state, jnp.zeros((B_pad - B, S), state.dtype)], axis=0)

    grid = (B_pad // tile_b,)

    def _resident(shape):
        # Constant index_map -> block re-used every grid step, DMA'd once.
        return pl.BlockSpec(shape, lambda i: (0, 0))

    wbytes = sum(a.size * a.dtype.itemsize for a in (w1p, b1p, w2p, b2p, w3p, b3p))
    cost = pl.CostEstimate(
        flops=2 * B_pad * (S * EH + EH * EH + EH * E_pad),
        bytes_accessed=state.size * 4 + wbytes + B_pad * E_pad * 4,
        transcendentals=0,
    )

    out = pl.pallas_call(
        _ensemble_mlp_kernel,
        out_shape=jax.ShapeDtypeStruct((B_pad, E_pad), jnp.float32),
        grid=grid,
        in_specs=[
            pl.BlockSpec((tile_b, S), lambda i: (i, 0)),   # activations: tiled
            _resident(w1p.shape), _resident(b1p.shape),
            _resident(w2p.shape), _resident(b2p.shape),
            _resident(w3p.shape), _resident(b3p.shape),
        ],
        out_specs=pl.BlockSpec((tile_b, E_pad), lambda i: (i, 0)),
        compiler_params=pltpu.CompilerParams(
            dimension_semantics=("parallel",)),
        cost_estimate=cost,
    )(state, w1p, b1p, w2p, b2p, w3p, b3p)

    # Drop batch padding and dummy ensemble members.
    return out[:B, :n_ensemble]


# ---------------------------------------------------------------------------
# Parameter init (mimics nn.Linear uniform(-1/sqrt(fan_in), +)) and packing.
# ---------------------------------------------------------------------------
def init_params(key, state_dim, hidden_dim, n_ensemble):
    def linear(k, e, fan_in, fan_out):
        bound = 1.0 / math.sqrt(fan_in)
        kw, kb = jax.random.split(k)
        w = jax.random.uniform(kw, (e, fan_in, fan_out), jnp.float32,
                               -bound, bound)
        b = jax.random.uniform(kb, (e, 1, fan_out), jnp.float32,
                               -bound, bound)
        return w, b

    k1, k2, k3 = jax.random.split(key, 3)
    w1, b1 = linear(k1, n_ensemble, state_dim, hidden_dim)
    w2, b2 = linear(k2, n_ensemble, hidden_dim, hidden_dim)
    w3, b3 = linear(k3, n_ensemble, hidden_dim, 1)
    return (w1, b1, w2, b2, w3, b3)


def pack_params(params, *, lane_align=128, weight_dtype=jnp.float32):
    """One-time layout packing: ensemble along the lane axis, padded so the
    packed width E_pad*H is a multiple of `lane_align` (dummy members have
    zero weights AND zero biases, so their outputs are exactly 0 and are
    sliced away by the wrapper).

    W1 [E,S,H]   -> [S, E_pad*H]
    W2 [E,H,H]   -> block-diag [E_pad*H, E_pad*H]
    W3 [E,H,1]   -> block-diag [E_pad*H, E_pad]
    biases       -> row vectors in matching e-major column order.
    """
    w1, b1, w2, b2, w3, b3 = params
    E, S, H = w1.shape

    # Smallest ensemble-count granularity such that E_pad*H % lane_align == 0.
    step = _lcm(H, lane_align) // H
    E_pad = _round_up(E, step)
    pad = E_pad - E
    if pad:
        zp = lambda a, shape: jnp.concatenate(
            [a, jnp.zeros((pad,) + shape, a.dtype)], axis=0)
        w1, b1 = zp(w1, (S, H)), zp(b1, (1, H))
        w2, b2 = zp(w2, (H, H)), zp(b2, (1, H))
        w3, b3 = zp(w3, (H, 1)), zp(b3, (1, 1))

    w1p = jnp.transpose(w1, (1, 0, 2)).reshape(S, E_pad * H).astype(weight_dtype)
    b1p = b1.reshape(1, E_pad * H)

    w2p = jax.scipy.linalg.block_diag(
        *[w2[e] for e in range(E_pad)]).astype(weight_dtype)   # (E_pad*H, E_pad*H)
    b2p = b2.reshape(1, E_pad * H)

    w3p = jax.scipy.linalg.block_diag(
        *[w3[e] for e in range(E_pad)]).astype(weight_dtype)   # (E_pad*H, E_pad)
    b3p = b3.reshape(1, E_pad)

    return (w1p, b1p, w2p, b2p, w3p, b3p)


# ---------------------------------------------------------------------------
# Pure-JAX reference (unpacked, per-member) for correctness check.
# ---------------------------------------------------------------------------
def reference_forward(state, params):
    w1, b1, w2, b2, w3, b3 = params
    h1 = jnp.maximum(jnp.einsum('bs,esh->ebh', state, w1) + b1, 0.0)
    h2 = jnp.maximum(jnp.einsum('ebh,ehk->ebk', h1, w2) + b2, 0.0)
    out = jnp.einsum('ebh,eho->ebo', h2, w3) + b3            # [E, B, 1]
    return jnp.transpose(out[:, :, 0], (1, 0))                # [B, E]


if __name__ == "__main__":
    # Small, TPU-friendly shapes consistent with the module's forward.
    B, STATE_DIM, HIDDEN, N_ENSEMBLE = 8, 16, 32, 10

    key = jax.random.PRNGKey(0)
    k_params, k_state = jax.random.split(key)

    params = init_params(k_params, STATE_DIM, HIDDEN, N_ENSEMBLE)
    packed = pack_params(params)                 # f32, lane-padded (E_pad=12)
    state = jax.random.normal(k_state, (B, STATE_DIM), jnp.float32)

    out = reward_model_ensemble_forward(state, packed, N_ENSEMBLE)
    out = jax.block_until_ready(out)

    ref = reference_forward(state, params)
    assert out.shape == (B, N_ENSEMBLE), out.shape
    assert jnp.allclose(out, ref, atol=1e-5, rtol=1e-5), \
        f"max err {jnp.max(jnp.abs(out - ref))}"

    print("KERNEL_OK")
</pallas_src>

<mosaic_0001>
module attributes {stable_mosaic.version = 11 : i64} {
  func.func @_ensemble_mlp_kernel(%arg0: i32, %arg1: memref<8x16xf32, #tpu.memory_space<vmem>>, %arg2: memref<16x384xf32, #tpu.memory_space<vmem>>, %arg3: memref<1x384xf32, #tpu.memory_space<vmem>>, %arg4: memref<384x384xf32, #tpu.memory_space<vmem>>, %arg5: memref<1x384xf32, #tpu.memory_space<vmem>>, %arg6: memref<384x12xf32, #tpu.memory_space<vmem>>, %arg7: memref<1x12xf32, #tpu.memory_space<vmem>>, %arg8: memref<8x12xf32, #tpu.memory_space<vmem>>) attributes {dimension_semantics = [#tpu.dimension_semantics<parallel>], iteration_bounds = array<i64: 1>, scalar_prefetch = 0 : i64, scratch_operands = 0 : i64, tpu.core_type = #tpu.core_type<tc>, window_params = [{transform_indices = @transform_0, window_bounds = array<i64: 8, 16>}, {pipeline_mode = #tpu.pipeline_mode<synchronous>, transform_indices = @transform_1, window_bounds = array<i64: 16, 384>}, {pipeline_mode = #tpu.pipeline_mode<synchronous>, transform_indices = @transform_2, window_bounds = array<i64: 1, 384>}, {pipeline_mode = #tpu.pipeline_mode<synchronous>, transform_indices = @transform_3, window_bounds = array<i64: 384, 384>}, {pipeline_mode = #tpu.pipeline_mode<synchronous>, transform_indices = @transform_4, window_bounds = array<i64: 1, 384>}, {pipeline_mode = #tpu.pipeline_mode<synchronous>, transform_indices = @transform_5, window_bounds = array<i64: 384, 12>}, {pipeline_mode = #tpu.pipeline_mode<synchronous>, transform_indices = @transform_6, window_bounds = array<i64: 1, 12>}, {transform_indices = @transform_7, window_bounds = array<i64: 8, 12>}]} {
    %c0 = arith.constant 0 : index
    %c0_0 = arith.constant 0 : index
    %0 = vector.load %arg1[%c0, %c0_0] : memref<8x16xf32, #tpu.memory_space<vmem>>, vector<8x16xf32>
    %c0_1 = arith.constant 0 : index
    %c0_2 = arith.constant 0 : index
    %1 = vector.load %arg2[%c0_1, %c0_2] : memref<16x384xf32, #tpu.memory_space<vmem>>, vector<16x384xf32>
    %cst = arith.constant dense<0.000000e+00> : vector<8x384xf32>
    %2 = tpu.matmul %0, %1, %cst {dimension_numbers = #tpu.dot_dimension_numbers<[1], [0], [0], [1], [0, 0, 1, 1], [], []>} : vector<8x16xf32>, vector<16x384xf32>, vector<8x384xf32> -> vector<8x384xf32>
    %c0_3 = arith.constant 0 : index
    %c0_4 = arith.constant 0 : index
    %3 = vector.load %arg3[%c0_3, %c0_4] : memref<1x384xf32, #tpu.memory_space<vmem>>, vector<1x384xf32>
    %4 = vector.broadcast %3 : vector<1x384xf32> to vector<8x384xf32>
    %5 = arith.addf %2, %4 : vector<8x384xf32>
    %cst_5 = arith.constant 0.000000e+00 : f32
    %6 = vector.broadcast %cst_5 : f32 to vector<8x384xf32>
    %7 = arith.maximumf %5, %6 : vector<8x384xf32>
    %c0_6 = arith.constant 0 : index
    %c0_7 = arith.constant 0 : index
    %8 = vector.load %arg4[%c0_6, %c0_7] : memref<384x384xf32, #tpu.memory_space<vmem>>, vector<384x384xf32>
    %cst_8 = arith.constant dense<0.000000e+00> : vector<8x384xf32>
    %9 = tpu.matmul %7, %8, %cst_8 {dimension_numbers = #tpu.dot_dimension_numbers<[1], [0], [0], [1], [0, 0, 1, 1], [], []>} : vector<8x384xf32>, vector<384x384xf32>, vector<8x384xf32> -> vector<8x384xf32>
    %c0_9 = arith.constant 0 : index
    %c0_10 = arith.constant 0 : index
    %10 = vector.load %arg5[%c0_9, %c0_10] : memref<1x384xf32, #tpu.memory_space<vmem>>, vector<1x384xf32>
    %11 = vector.broadcast %10 : vector<1x384xf32> to vector<8x384xf32>
    %12 = arith.addf %9, %11 : vector<8x384xf32>
    %cst_11 = arith.constant 0.000000e+00 : f32
    %13 = vector.broadcast %cst_11 : f32 to vector<8x384xf32>
    %14 = arith.maximumf %12, %13 : vector<8x384xf32>
    %c0_12 = arith.constant 0 : index
    %c0_13 = arith.constant 0 : index
    %15 = vector.load %arg6[%c0_12, %c0_13] : memref<384x12xf32, #tpu.memory_space<vmem>>, vector<384x12xf32>
    %cst_14 = arith.constant dense<0.000000e+00> : vector<8x12xf32>
    %16 = tpu.matmul %14, %15, %cst_14 {dimension_numbers = #tpu.dot_dimension_numbers<[1], [0], [0], [1], [0, 0, 1, 1], [], []>} : vector<8x384xf32>, vector<384x12xf32>, vector<8x12xf32> -> vector<8x12xf32>
    %c0_15 = arith.constant 0 : index
    %c0_16 = arith.constant 0 : index
    %17 = vector.load %arg7[%c0_15, %c0_16] : memref<1x12xf32, #tpu.memory_space<vmem>>, vector<1x12xf32>
    %18 = vector.broadcast %17 : vector<1x12xf32> to vector<8x12xf32>
    %19 = arith.addf %16, %18 : vector<8x12xf32>
    %c0_17 = arith.constant 0 : index
    %c0_18 = arith.constant 0 : index
    %20 = vector.load %arg8[%c0_17, %c0_18] : memref<8x12xf32, #tpu.memory_space<vmem>>, vector<8x12xf32>
    tpu.vector_store %arg8[%c0_17, %c0_18], %19 {strides = array<i32>} : memref<8x12xf32, #tpu.memory_space<vmem>>, vector<8x12xf32>,
    return
  }
  func.func @transform_0(%arg0: i32) -> (i32, i32) {
    %c0_i32 = arith.constant 0 : i32
    %c0_i32_0 = arith.constant 0 : i32
    return %arg0, %c0_i32 : i32, i32
  }
  func.func @transform_1(%arg0: i32) -> (i32, i32) {
    %c0_i32 = arith.constant 0 : i32
    %c0_i32_0 = arith.constant 0 : i32
    %c0_i32_1 = arith.constant 0 : i32
    return %c0_i32, %c0_i32_0 : i32, i32
  }
  func.func @transform_2(%arg0: i32) -> (i32, i32) {
    %c0_i32 = arith.constant 0 : i32
    %c0_i32_0 = arith.constant 0 : i32
    %c0_i32_1 = arith.constant 0 : i32
    return %c0_i32, %c0_i32_0 : i32, i32
  }
  func.func @transform_3(%arg0: i32) -> (i32, i32) {
    %c0_i32 = arith.constant 0 : i32
    %c0_i32_0 = arith.constant 0 : i32
    %c0_i32_1 = arith.constant 0 : i32
    return %c0_i32, %c0_i32_0 : i32, i32
  }
  func.func @transform_4(%arg0: i32) -> (i32, i32) {
    %c0_i32 = arith.constant 0 : i32
    %c0_i32_0 = arith.constant 0 : i32
    %c0_i32_1 = arith.constant 0 : i32
    return %c0_i32, %c0_i32_0 : i32, i32
  }
  func.func @transform_5(%arg0: i32) -> (i32, i32) {
    %c0_i32 = arith.constant 0 : i32
    %c0_i32_0 = arith.constant 0 : i32
    %c0_i32_1 = arith.constant 0 : i32
    return %c0_i32, %c0_i32_0 : i32, i32
  }
  func.func @transform_6(%arg0: i32) -> (i32, i32) {
    %c0_i32 = arith.constant 0 : i32
    %c0_i32_0 = arith.constant 0 : i32
    %c0_i32_1 = arith.constant 0 : i32
    return %c0_i32, %c0_i32_0 : i32, i32
  }
  func.func @transform_7(%arg0: i32) -> (i32, i32) {
    %c0_i32 = arith.constant 0 : i32
    %c0_i32_0 = arith.constant 0 : i32
    return %arg0, %c0_i32 : i32, i32
  }
}

</mosaic_0001>

<llo_original>
// kernel: tpu_custom_call.1
$region0: #{tpu_custom_call.1}
  #allocation0 [shape = 'u32[]', space=smem, size = 0x4, offset = 0x4, fixed_abs, tag = 'smem constant byte address 0x4 - core index']
  #allocation1 [shape = 'u32[72,128]{1,0:T(1,128)}', space=vmem, size = 0x9000, scoped, tag = 'internal scratch']
  %s0 = inlined_call_operand.vmem [shape: f32[8,16], index: 0, kind: input, shape index: {}]
  %s1 = inlined_call_operand.vmem [shape: f32[16,384], index: 1, kind: input, shape index: {}]
  %s2 = inlined_call_operand.vmem [shape: f32[1,384], index: 2, kind: input, shape index: {}]
  %s3 = inlined_call_operand.hbm [shape: f32[384,384], index: 3, kind: input, shape index: {}]
  %s4 = inlined_call_operand.vmem [shape: f32[1,384], index: 4, kind: input, shape index: {}]
  %s5 = inlined_call_operand.vmem [shape: f32[384,12], index: 5, kind: input, shape index: {}]
  %s6 = inlined_call_operand.vmem [shape: f32[1,12], index: 6, kind: input, shape index: {}]
  %s7 = inlined_call_operand.hbm [shape: f32[8,12], index: 7, kind: output, shape index: {}]
  %s8 = sld [smem:[#allocation0]]
  $region42: #{tpu_custom_call.1} parent=0
    _
  %s10 = ssub.s32 1, %s8
  %s11 = scalar_select 0, %s10, %s8
  $region1: #{tpu_custom_call.1} parent=0
    #allocation2 [shape = 'u8[589824]{0}', space=vmem, size = 0x90000, scoped, tag = 'input window, operand 3, single buffered']
    #allocation3 [shape = 's32[1]{0}', space=sflag, size = 0x4, scoped, tag = 'scoped memory for tpu_custom_call.1']
    #allocation4 [shape = 's32[1]{0}', space=sflag, size = 0x4, scoped, tag = 'scoped memory for tpu_custom_call.1']
    #allocation5 [shape = 'u8[4096]{0}', space=vmem, size = 0x1000, scoped, tag = 'output window, operand 0, single buffered']
    %12 = vsyncpa [#allocation3], 0
    %13 = vsyncpa [#allocation4], 0
    // Predicated region
    $region2: #{tpu_custom_call.1} parent=1 // pred_check
      _
    $region3: #{tpu_custom_call.1} parent=1 // pred_check_branch
      %15 = sbr.rel (0) target = $region5
    $region4: #{tpu_custom_call.1} parent=1 // pred_region
      _
    $region5: #{tpu_custom_call.1} parent=1 // pred_fallthru
      _
    // Predicated region
    $region6: #{tpu_custom_call.1} parent=1 // pred_check
      _
    $region7: #{tpu_custom_call.1} parent=1 // pred_check_branch
      %17 = sbr.rel (0) target = $region9
    $region8: #{tpu_custom_call.1} parent=1 // pred_region
      _
    $region9: #{tpu_custom_call.1} parent=1 // pred_fallthru
      _
    // Predicated region
    $region10: #{tpu_custom_call.1} parent=1 // pred_check
      _
    $region11: #{tpu_custom_call.1} parent=1 // pred_check_branch
      %19 = sbr.rel (0) target = $region13
    $region12: #{tpu_custom_call.1} parent=1 // pred_region
      _
    $region13: #{tpu_custom_call.1} parent=1 // pred_fallthru
      _
    // Predicated region
    $region14: #{tpu_custom_call.1} parent=1 // pred_check
      _
    $region15: #{tpu_custom_call.1} parent=1 // pred_check_branch
      %21 = sbr.rel (0) target = $region17
    $region16: #{tpu_custom_call.1} parent=1 // pred_region
      %23 = vsyncadd [#allocation3], 0
      %s24 = sshll.u32 %s3, 4
      %s25 = int_to_ptr.hbm [resolvable:$true] %s24
      %s26 = sshll.u32 [#allocation2], 4
      %s27 = int_to_ptr.vmem [resolvable:$true] %s26
      %32 = dma.hbm_to_vmem [thread:$0]  %s25, 18432, %s27, [#allocation3], 384, 384, 24
    $region17: #{tpu_custom_call.1} parent=1 // pred_fallthru
      _
    // Predicated region
    $region18: #{tpu_custom_call.1} parent=1 // pred_check
      _
    $region19: #{tpu_custom_call.1} parent=1 // pred_check_branch
      %34 = sbr.rel (0) target = $region21
    $region20: #{tpu_custom_call.1} parent=1 // pred_region
      _
    $region21: #{tpu_custom_call.1} parent=1 // pred_fallthru
      _
    // Predicated region
    $region22: #{tpu_custom_call.1} parent=1 // pred_check
      _
    $region23: #{tpu_custom_call.1} parent=1 // pred_check_branch
      %36 = sbr.rel (0) target = $region25
    $region24: #{tpu_custom_call.1} parent=1 // pred_region
      _
    $region25: #{tpu_custom_call.1} parent=1 // pred_fallthru
      _
    // Predicated region
    $region26: #{tpu_custom_call.1} parent=1 // pred_check
      _
    $region27: #{tpu_custom_call.1} parent=1 // pred_check_branch
      %38 = sbr.rel (0) target = $region29
    $region28: #{tpu_custom_call.1} parent=1 // pred_region
      _
    $region29: #{tpu_custom_call.1} parent=1 // pred_fallthru
      _
    // Predicated region
    $region30: #{tpu_custom_call.1} parent=1 // pred_check
      _
    $region31: #{tpu_custom_call.1} parent=1 // pred_check_branch
      %40 = sbr.rel (0) target = $region33
    $region32: #{tpu_custom_call.1} parent=1 // pred_region
      %42 = dma.done [#allocation3], 18432
    $region33: #{tpu_custom_call.1} parent=1 // pred_fallthru
      _
    %v43 = vld [vmem:[%s0] sm:$0xff]
    %v44 = vld [vmem:[%s1] sm:$0xff]
    %v45 = vld [vmem:[%s1 + $0x8] sm:$0xff]
    %v46 = vld [vmem:[%s1 + $0x10] sm:$0xff]
    %v47 = vld [vmem:[%s1 + $0x18] sm:$0xff]
    %v48 = vld [vmem:[%s1 + $0x20] sm:$0xff]
    %v49 = vld [vmem:[%s1 + $0x28] sm:$0xff]
    %v50 = vld [vmem:[%s2] sm:$0x7]
    %v52 = vperm.slane %v50, 0
    %v53 = vperm.slane %v50, 1
    %v54 = vperm.slane %v50, 2
    %vm58 = vcmask 130048
    %v60 = vsel %vm58, %v43, 0
    %62 = vmatpush.msra.mxu0 0.0
    %63 = vmatpush.msra.mxu0 0.0
    %64 = vmatpush.msra.mxu0 0.0
    %65 = vmatpush.msra.mxu0 0.0
    %66 = vmatpush.msra.mxu0 0.0
    %67 = vmatpush.msra.mxu0 0.0
    %68 = vmatpush.msra.mxu0 0.0
    %69 = vmatpush.msra.mxu0 0.0
    %70 = vmatpush.msra.mxu0 0.0
    %71 = vmatpush.msra.mxu0 0.0
    %72 = vmatpush.msra.mxu0 0.0
    %73 = vmatpush.msra.mxu0 0.0
    %74 = vmatpush.msra.mxu0 0.0
    %75 = vmatpush.msra.mxu0 0.0
    %76 = vmatpush.msra.mxu0 %v47
    %77 = vmatpush.msra.mxu0 %v44
    %78 = vmatmul.f32.gmra.mxu0 %v60
    %v79 = vpop.f32.mrf.mxu0
    %v80 = vadd.f32 %v52, %v79
    %81 = vdwg.mxu0
    %82 = vmatpush.msra.mxu0 0.0
    %83 = vmatpush.msra.mxu0 0.0
    %84 = vmatpush.msra.mxu0 0.0
    %85 = vmatpush.msra.mxu0 0.0
    %86 = vmatpush.msra.mxu0 0.0
    %87 = vmatpush.msra.mxu0 0.0
    %88 = vmatpush.msra.mxu0 0.0
    %89 = vmatpush.msra.mxu0 0.0
    %90 = vmatpush.msra.mxu0 0.0
    %91 = vmatpush.msra.mxu0 0.0
    %92 = vmatpush.msra.mxu0 0.0
    %93 = vmatpush.msra.mxu0 0.0
    %94 = vmatpush.msra.mxu0 0.0
    %95 = vmatpush.msra.mxu0 0.0
    %96 = vmatpush.msra.mxu0 %v48
    %97 = vmatpush.msra.mxu0 %v45
    %98 = vmatmul.f32.gmra.mxu0 %v60
    %v99 = vpop.f32.mrf.mxu0
    %v100 = vadd.f32 %v53, %v99
    %101 = vdwg.mxu0
    %102 = vmatpush.msra.mxu0 0.0
    %103 = vmatpush.msra.mxu0 0.0
    %104 = vmatpush.msra.mxu0 0.0
    %105 = vmatpush.msra.mxu0 0.0
    %106 = vmatpush.msra.mxu0 0.0
    %107 = vmatpush.msra.mxu0 0.0
    %108 = vmatpush.msra.mxu0 0.0
    %109 = vmatpush.msra.mxu0 0.0
    %110 = vmatpush.msra.mxu0 0.0
    %111 = vmatpush.msra.mxu0 0.0
    %112 = vmatpush.msra.mxu0 0.0
    %113 = vmatpush.msra.mxu0 0.0
    %114 = vmatpush.msra.mxu0 0.0
    %115 = vmatpush.msra.mxu0 0.0
    %116 = vmatpush.msra.mxu0 %v49
    %117 = vmatpush.msra.mxu0 %v46
    %118 = vmatmul.f32.gmra.mxu0 %v60
    %v119 = vpop.f32.mrf.mxu0
    %v120 = vadd.f32 %v54, %v119
    %121 = vdwg.mxu0
    %v122 = vmax.f32 %v80, 0.0
    %v123 = vmax.f32 %v100, 0.0
    %v124 = vmax.f32 %v120, 0.0
    %v125 = vld [vmem:[#allocation2] sm:$0xff]
    %v126 = vld [vmem:[#allocation2 + $0x8] sm:$0xff]
    %v127 = vld [vmem:[#allocation2 + $0x10] sm:$0xff]
    %v128 = vld [vmem:[#allocation2 + $0x18] sm:$0xff]
    %v129 = vld [vmem:[#allocation2 + $0x20] sm:$0xff]
    %v130 = vld [vmem:[#allocation2 + $0x28] sm:$0xff]
    %v131 = vld [vmem:[#allocation2 + $0x30] sm:$0xff]
    %v132 = vld [vmem:[#allocation2 + $0x38] sm:$0xff]
    %v133 = vld [vmem:[#allocation2 + $0x40] sm:$0xff]
    %v134 = vld [vmem:[#allocation2 + $0x48] sm:$0xff]
    %v135 = vld [vmem:[#allocation2 + $0x50] sm:$0xff]
    %v136 = vld [vmem:[#allocation2 + $0x58] sm:$0xff]
    %v137 = vld [vmem:[#allocation2 + $0x60] sm:$0xff]
    %v138 = vld [vmem:[#allocation2 + $0x68] sm:$0xff]
    %v139 = vld [vmem:[#allocation2 + $0x70] sm:$0xff]
    %v140 = vld [vmem:[#allocation2 + $0x78] sm:$0xff]
    %v141 = vld [vmem:[#allocation2 + $0x80] sm:$0xff]
    %v142 = vld [vmem:[#allocation2 + $0x88] sm:$0xff]
    %v143 = vld [vmem:[#allocation2 + $0x90] sm:$0xff]
    %v144 = vld [vmem:[#allocation2 + $0x98] sm:$0xff]
    %v145 = vld [vmem:[#allocation2 + $0xa0] sm:$0xff]
    %v146 = vld [vmem:[#allocation2 + $0xa8] sm:$0xff]
    %v147 = vld [vmem:[#allocation2 + $0xb0] sm:$0xff]
    %v148 = vld [vmem:[#allocation2 + $0xb8] sm:$0xff]
    %v149 = vld [vmem:[#allocation2 + $0xc0] sm:$0xff]
    %v150 = vld [vmem:[#allocation2 + $0xc8] sm:$0xff]
    %v151 = vld [vmem:[#allocation2 + $0xd0] sm:$0xff]
    %v152 = vld [vmem:[#allocation2 + $0xd8] sm:$0xff]
    %v153 = vld [vmem:[#allocation2 + $0xe0] sm:$0xff]
    %v154 = vld [vmem:[#allocation2 + $0xe8] sm:$0xff]
    %v155 = vld [vmem:[#allocation2 + $0xf0] sm:$0xff]
    %v156 = vld [vmem:[#allocation2 + $0xf8] sm:$0xff]
    %v157 = vld [vmem:[#allocation2 + $0x100] sm:$0xff]
    %v158 = vld [vmem:[#allocation2 + $0x108] sm:$0xff]
    %v159 = vld [vmem:[#allocation2 + $0x110] sm:$0xff]
    %v160 = vld [vmem:[#allocation2 + $0x118] sm:$0xff]
    %v161 = vld [vmem:[#allocation2 + $0x120] sm:$0xff]
    %v162 = vld [vmem:[#allocation2 + $0x128] sm:$0xff]
    %v163 = vld [vmem:[#allocation2 + $0x130] sm:$0xff]
    %v164 = vld [vmem:[#allocation2 + $0x138] sm:$0xff]
    %v165 = vld [vmem:[#allocation2 + $0x140] sm:$0xff]
    %v166 = vld [vmem:[#allocation2 + $0x148] sm:$0xff]
    %v167 = vld [vmem:[#allocation2 + $0x150] sm:$0xff]
    %v168 = vld [vmem:[#allocation2 + $0x158] sm:$0xff]
    %v169 = vld [vmem:[#allocation2 + $0x160] sm:$0xff]
    %v170 = vld [vmem:[#allocation2 + $0x168] sm:$0xff]
    %v171 = vld [vmem:[#allocation2 + $0x170] sm:$0xff]
    %v172 = vld [vmem:[#allocation2 + $0x178] sm:$0xff]
    %v173 = vld [vmem:[#allocation2 + $0x180] sm:$0xff]
    %v174 = vld [vmem:[#allocation2 + $0x188] sm:$0xff]
    %v175 = vld [vmem:[#allocation2 + $0x190] sm:$0xff]
    %v176 = vld [vmem:[#allocation2 + $0x198] sm:$0xff]
    %v177 = vld [vmem:[#allocation2 + $0x1a0] sm:$0xff]
    %v178 = vld [vmem:[#allocation2 + $0x1a8] sm:$0xff]
    %v179 = vld [vmem:[#allocation2 + $0x1b0] sm:$0xff]
    %v180 = vld [vmem:[#allocation2 + $0x1b8] sm:$0xff]
    %v181 = vld [vmem:[#allocation2 + $0x1c0] sm:$0xff]
    %v182 = vld [vmem:[#allocation2 + $0x1c8] sm:$0xff]
    %v183 = vld [vmem:[#allocation2 + $0x1d0] sm:$0xff]
    %v184 = vld [vmem:[#allocation2 + $0x1d8] sm:$0xff]
    %v185 = vld [vmem:[#allocation2 + $0x1e0] sm:$0xff]
    %v186 = vld [vmem:[#allocation2 + $0x1e8] sm:$0xff]
    %v187 = vld [vmem:[#allocation2 + $0x1f0] sm:$0xff]
    %v188 = vld [vmem:[#allocation2 + $0x1f8] sm:$0xff]
    %v189 = vld [vmem:[#allocation2 + $0x200] sm:$0xff]
    %v190 = vld [vmem:[#allocation2 + $0x208] sm:$0xff]
    %v191 = vld [vmem:[#allocation2 + $0x210] sm:$0xff]
    %v192 = vld [vmem:[#allocation2 + $0x218] sm:$0xff]
    %v193 = vld [vmem:[#allocation2 + $0x220] sm:$0xff]
    %v194 = vld [vmem:[#allocation2 + $0x228] sm:$0xff]
    %v195 = vld [vmem:[#allocation2 + $0x230] sm:$0xff]
    %v196 = vld [vmem:[#allocation2 + $0x238] sm:$0xff]
    %v197 = vld [vmem:[#allocation2 + $0x240] sm:$0xff]
    %v198 = vld [vmem:[#allocation2 + $0x248] sm:$0xff]
    %v199 = vld [vmem:[#allocation2 + $0x250] sm:$0xff]
    %v200 = vld [vmem:[#allocation2 + $0x258] sm:$0xff]
    %v201 = vld [vmem:[#allocation2 + $0x260] sm:$0xff]
    %v202 = vld [vmem:[#allocation2 + $0x268] sm:$0xff]
    %v203 = vld [vmem:[#allocation2 + $0x270] sm:$0xff]
    %v204 = vld [vmem:[#allocation2 + $0x278] sm:$0xff]
    %v205 = vld [vmem:[#allocation2 + $0x280] sm:$0xff]
    %v206 = vld [vmem:[#allocation2 + $0x288] sm:$0xff]
    %v207 = vld [vmem:[#allocation2 + $0x290] sm:$0xff]
    %v208 = vld [vmem:[#allocation2 + $0x298] sm:$0xff]
    %v209 = vld [vmem:[#allocation2 + $0x2a0] sm:$0xff]
    %v210 = vld [vmem:[#allocation2 + $0x2a8] sm:$0xff]
    %v211 = vld [vmem:[#allocation2 + $0x2b0] sm:$0xff]
    %v212 = vld [vmem:[#allocation2 + $0x2b8] sm:$0xff]
    %v213 = vld [vmem:[#allocation2 + $0x2c0] sm:$0xff]
    %v214 = vld [vmem:[#allocation2 + $0x2c8] sm:$0xff]
    %v215 = vld [vmem:[#allocation2 + $0x2d0] sm:$0xff]
    %v216 = vld [vmem:[#allocation2 + $0x2d8] sm:$0xff]
    %v217 = vld [vmem:[#allocation2 + $0x2e0] sm:$0xff]
    %v218 = vld [vmem:[#allocation2 + $0x2e8] sm:$0xff]
    %v219 = vld [vmem:[#allocation2 + $0x2f0] sm:$0xff]
    %v220 = vld [vmem:[#allocation2 + $0x2f8] sm:$0xff]
    %v221 = vld [vmem:[#allocation2 + $0x300] sm:$0xff]
    %v222 = vld [vmem:[#allocation2 + $0x308] sm:$0xff]
    %v223 = vld [vmem:[#allocation2 + $0x310] sm:$0xff]
    %v224 = vld [vmem:[#allocation2 + $0x318] sm:$0xff]
    %v225 = vld [vmem:[#allocation2 + $0x320] sm:$0xff]
    %v226 = vld [vmem:[#allocation2 + $0x328] sm:$0xff]
    %v227 = vld [vmem:[#allocation2 + $0x330] sm:$0xff]
    %v228 = vld [vmem:[#allocation2 + $0x338] sm:$0xff]
    %v229 = vld [vmem:[#allocation2 + $0x340] sm:$0xff]
    %v230 = vld [vmem:[#allocation2 + $0x348] sm:$0xff]
    %v231 = vld [vmem:[#allocation2 + $0x350] sm:$0xff]
    %v232 = vld [vmem:[#allocation2 + $0x358] sm:$0xff]
    %v233 = vld [vmem:[#allocation2 + $0x360] sm:$0xff]
    %v234 = vld [vmem:[#allocation2 + $0x368] sm:$0xff]
    %v235 = vld [vmem:[#allocation2 + $0x370] sm:$0xff]
    %v236 = vld [vmem:[#allocation2 + $0x378] sm:$0xff]
    %v237 = vld [vmem:[#allocation2 + $0x380] sm:$0xff]
    %v238 = vld [vmem:[#allocation2 + $0x388] sm:$0xff]
    %v239 = vld [vmem:[#allocation2 + $0x390] sm:$0xff]
    %v240 = vld [vmem:[#allocation2 + $0x398] sm:$0xff]
    %v241 = vld [vmem:[#allocation2 + $0x3a0] sm:$0xff]
    %v242 = vld [vmem:[#allocation2 + $0x3a8] sm:$0xff]
    %v243 = vld [vmem:[#allocation2 + $0x3b0] sm:$0xff]
    %v244 = vld [vmem:[#allocation2 + $0x3b8] sm:$0xff]
    %v245 = vld [vmem:[#allocation2 + $0x3c0] sm:$0xff]
    %v246 = vld [vmem:[#allocation2 + $0x3c8] sm:$0xff]
    %v247 = vld [vmem:[#allocation2 + $0x3d0] sm:$0xff]
    %v248 = vld [vmem:[#allocation2 + $0x3d8] sm:$0xff]
    %v249 = vld [vmem:[#allocation2 + $0x3e0] sm:$0xff]
    %v250 = vld [vmem:[#allocation2 + $0x3e8] sm:$0xff]
    %v251 = vld [vmem:[#allocation2 + $0x3f0] sm:$0xff]
    %v252 = vld [vmem:[#allocation2 + $0x3f8] sm:$0xff]
    %v253 = vld [vmem:[#allocation2 + $0x400] sm:$0xff]
    %v254 = vld [vmem:[#allocation2 + $0x408] sm:$0xff]
    %v255 = vld [vmem:[#allocation2 + $0x410] sm:$0xff]
    %v256 = vld [vmem:[#allocation2 + $0x418] sm:$0xff]
    %v257 = vld [vmem:[#allocation2 + $0x420] sm:$0xff]
    %v258 = vld [vmem:[#allocation2 + $0x428] sm:$0xff]
    %v259 = vld [vmem:[#allocation2 + $0x430] sm:$0xff]
    %v260 = vld [vmem:[#allocation2 + $0x438] sm:$0xff]
    %v261 = vld [vmem:[#allocation2 + $0x440] sm:$0xff]
    %v262 = vld [vmem:[#allocation2 + $0x448] sm:$0xff]
    %v263 = vld [vmem:[#allocation2 + $0x450] sm:$0xff]
    %v264 = vld [vmem:[#allocation2 + $0x458] sm:$0xff]
    %v265 = vld [vmem:[#allocation2 + $0x460] sm:$0xff]
    %v266 = vld [vmem:[#allocation2 + $0x468] sm:$0xff]
    %v267 = vld [vmem:[#allocation2 + $0x470] sm:$0xff]
    %v268 = vld [vmem:[#allocation2 + $0x478] sm:$0xff]
    %v269 = vld [vmem:[%s4] sm:$0x7]
    %v271 = vperm.slane %v269, 0
    %v272 = vperm.slane %v269, 1
    %v273 = vperm.slane %v269, 2
    %277 = vmatpush.msra.mxu0 %v170
    %278 = vmatpush.msra.mxu0 %v167
    %279 = vmatpush.msra.mxu0 %v164
    %280 = vmatpush.msra.mxu0 %v161
    %281 = vmatpush.msra.mxu0 %v158
    %282 = vmatpush.msra.mxu0 %v155
    %283 = vmatpush.msra.mxu0 %v152
    %284 = vmatpush.msra.mxu0 %v149
    %285 = vmatpush.msra.mxu0 %v146
    %286 = vmatpush.msra.mxu0 %v143
    %287 = vmatpush.msra.mxu0 %v140
    %288 = vmatpush.msra.mxu0 %v137
    %289 = vmatpush.msra.mxu0 %v134
    %290 = vmatpush.msra.mxu0 %v131
    %291 = vmatpush.msra.mxu0 %v128
    %292 = vmatpush.msra.mxu0 %v125
    %293 = vmatmul.f32.gmra.mxu0 %v122
    %v294 = vpop.f32.mrf.mxu0
    %v295 = vadd.f32 %v271, %v294
    %296 = vdwg.mxu0
    %297 = vmatpush.msra.mxu0 %v218
    %298 = vmatpush.msra.mxu0 %v215
    %299 = vmatpush.msra.mxu0 %v212
    %300 = vmatpush.msra.mxu0 %v209
    %301 = vmatpush.msra.mxu0 %v206
    %302 = vmatpush.msra.mxu0 %v203
    %303 = vmatpush.msra.mxu0 %v200
    %304 = vmatpush.msra.mxu0 %v197
    %305 = vmatpush.msra.mxu0 %v194
    %306 = vmatpush.msra.mxu0 %v191
    %307 = vmatpush.msra.mxu0 %v188
    %308 = vmatpush.msra.mxu0 %v185
    %309 = vmatpush.msra.mxu0 %v182
    %310 = vmatpush.msra.mxu0 %v179
    %311 = vmatpush.msra.mxu0 %v176
    %312 = vmatpush.msra.mxu0 %v173
    %313 = vmatmul.f32.gmra.mxu0 %v123
    %v314 = vpop.f32.mrf.mxu0
    %v315 = vadd.f32 %v295, %v314
    %316 = vdwg.mxu0
    %317 = vmatpush.msra.mxu0 %v266
    %318 = vmatpush.msra.mxu0 %v263
    %319 = vmatpush.msra.mxu0 %v260
    %320 = vmatpush.msra.mxu0 %v257
    %321 = vmatpush.msra.mxu0 %v254
    %322 = vmatpush.msra.mxu0 %v251
    %323 = vmatpush.msra.mxu0 %v248
    %324 = vmatpush.msra.mxu0 %v245
    %325 = vmatpush.msra.mxu0 %v242
    %326 = vmatpush.msra.mxu0 %v239
    %327 = vmatpush.msra.mxu0 %v236
    %328 = vmatpush.msra.mxu0 %v233
    %329 = vmatpush.msra.mxu0 %v230
    %330 = vmatpush.msra.mxu0 %v227
    %331 = vmatpush.msra.mxu0 %v224
    %332 = vmatpush.msra.mxu0 %v221
    %333 = vmatmul.f32.gmra.mxu0 %v124
    %v334 = vpop.f32.mrf.mxu0
    %v335 = vadd.f32 %v315, %v334
    %336 = vdwg.mxu0
    %337 = vmatpush.msra.mxu0 %v171
    %338 = vmatpush.msra.mxu0 %v168
    %339 = vmatpush.msra.mxu0 %v165
    %340 = vmatpush.msra.mxu0 %v162
    %341 = vmatpush.msra.mxu0 %v159
    %342 = vmatpush.msra.mxu0 %v156
    %343 = vmatpush.msra.mxu0 %v153
    %344 = vmatpush.msra.mxu0 %v150
    %345 = vmatpush.msra.mxu0 %v147
    %346 = vmatpush.msra.mxu0 %v144
    %347 = vmatpush.msra.mxu0 %v141
    %348 = vmatpush.msra.mxu0 %v138
    %349 = vmatpush.msra.mxu0 %v135
    %350 = vmatpush.msra.mxu0 %v132
    %351 = vmatpush.msra.mxu0 %v129
    %352 = vmatpush.msra.mxu0 %v126
    %353 = vmatmul.f32.gmra.mxu0 %v122
    %v354 = vpop.f32.mrf.mxu0
    %v355 = vadd.f32 %v272, %v354
    %356 = vdwg.mxu0
    %357 = vmatpush.msra.mxu0 %v219
    %358 = vmatpush.msra.mxu0 %v216
    %359 = vmatpush.msra.mxu0 %v213
    %360 = vmatpush.msra.mxu0 %v210
    %361 = vmatpush.msra.mxu0 %v207
    %362 = vmatpush.msra.mxu0 %v204
    %363 = vmatpush.msra.mxu0 %v201
    %364 = vmatpush.msra.mxu0 %v198
    %365 = vmatpush.msra.mxu0 %v195
    %366 = vmatpush.msra.mxu0 %v192
    %367 = vmatpush.msra.mxu0 %v189
    %368 = vmatpush.msra.mxu0 %v186
    %369 = vmatpush.msra.mxu0 %v183
    %370 = vmatpush.msra.mxu0 %v180
    %371 = vmatpush.msra.mxu0 %v177
    %372 = vmatpush.msra.mxu0 %v174
    %373 = vmatmul.f32.gmra.mxu0 %v123
    %v374 = vpop.f32.mrf.mxu0
    %v375 = vadd.f32 %v355, %v374
    %376 = vdwg.mxu0
    %377 = vmatpush.msra.mxu0 %v267
    %378 = vmatpush.msra.mxu0 %v264
    %379 = vmatpush.msra.mxu0 %v261
    %380 = vmatpush.msra.mxu0 %v258
    %381 = vmatpush.msra.mxu0 %v255
    %382 = vmatpush.msra.mxu0 %v252
    %383 = vmatpush.msra.mxu0 %v249
    %384 = vmatpush.msra.mxu0 %v246
    %385 = vmatpush.msra.mxu0 %v243
    %386 = vmatpush.msra.mxu0 %v240
    %387 = vmatpush.msra.mxu0 %v237
    %388 = vmatpush.msra.mxu0 %v234
    %389 = vmatpush.msra.mxu0 %v231
    %390 = vmatpush.msra.mxu0 %v228
    %391 = vmatpush.msra.mxu0 %v225
    %392 = vmatpush.msra.mxu0 %v222
    %393 = vmatmul.f32.gmra.mxu0 %v124
    %v394 = vpop.f32.mrf.mxu0
    %v395 = vadd.f32 %v375, %v394
    %396 = vdwg.mxu0
    %397 = vmatpush.msra.mxu0 %v172
    %398 = vmatpush.msra.mxu0 %v169
    %399 = vmatpush.msra.mxu0 %v166
    %400 = vmatpush.msra.mxu0 %v163
    %401 = vmatpush.msra.mxu0 %v160
    %402 = vmatpush.msra.mxu0 %v157
    %403 = vmatpush.msra.mxu0 %v154
    %404 = vmatpush.msra.mxu0 %v151
    %405 = vmatpush.msra.mxu0 %v148
    %406 = vmatpush.msra.mxu0 %v145
    %407 = vmatpush.msra.mxu0 %v142
    %408 = vmatpush.msra.mxu0 %v139
    %409 = vmatpush.msra.mxu0 %v136
    %410 = vmatpush.msra.mxu0 %v133
    %411 = vmatpush.msra.mxu0 %v130
    %412 = vmatpush.msra.mxu0 %v127
    %413 = vmatmul.f32.gmra.mxu0 %v122
    %v414 = vpop.f32.mrf.mxu0
    %v415 = vadd.f32 %v273, %v414
    %416 = vdwg.mxu0
    %417 = vmatpush.msra.mxu0 %v220
    %418 = vmatpush.msra.mxu0 %v217
    %419 = vmatpush.msra.mxu0 %v214
    %420 = vmatpush.msra.mxu0 %v211
    %421 = vmatpush.msra.mxu0 %v208
    %422 = vmatpush.msra.mxu0 %v205
    %423 = vmatpush.msra.mxu0 %v202
    %424 = vmatpush.msra.mxu0 %v199
    %425 = vmatpush.msra.mxu0 %v196
    %426 = vmatpush.msra.mxu0 %v193
    %427 = vmatpush.msra.mxu0 %v190
    %428 = vmatpush.msra.mxu0 %v187
    %429 = vmatpush.msra.mxu0 %v184
    %430 = vmatpush.msra.mxu0 %v181
    %431 = vmatpush.msra.mxu0 %v178
    %432 = vmatpush.msra.mxu0 %v175
    %433 = vmatmul.f32.gmra.mxu0 %v123
    %v434 = vpop.f32.mrf.mxu0
    %v435 = vadd.f32 %v415, %v434
    %436 = vdwg.mxu0
    %437 = vmatpush.msra.mxu0 %v268
    %438 = vmatpush.msra.mxu0 %v265
    %439 = vmatpush.msra.mxu0 %v262
    %440 = vmatpush.msra.mxu0 %v259
    %441 = vmatpush.msra.mxu0 %v256
    %442 = vmatpush.msra.mxu0 %v253
    %443 = vmatpush.msra.mxu0 %v250
    %444 = vmatpush.msra.mxu0 %v247
    %445 = vmatpush.msra.mxu0 %v244
    %446 = vmatpush.msra.mxu0 %v241
    %447 = vmatpush.msra.mxu0 %v238
    %448 = vmatpush.msra.mxu0 %v235
    %449 = vmatpush.msra.mxu0 %v232
    %450 = vmatpush.msra.mxu0 %v229
    %451 = vmatpush.msra.mxu0 %v226
    %452 = vmatpush.msra.mxu0 %v223
    %453 = vmatmul.f32.gmra.mxu0 %v124
    %v454 = vpop.f32.mrf.mxu0
    %v455 = vadd.f32 %v435, %v454
    %456 = vdwg.mxu0
    %v457 = vmax.f32 %v335, 0.0
    %v458 = vmax.f32 %v395, 0.0
    %v459 = vmax.f32 %v455, 0.0
    %v460 = vld [vmem:[%s5] sm:$0xff]
    %v461 = vld [vmem:[%s5 + $0x8] sm:$0xff]
    %v462 = vld [vmem:[%s5 + $0x10] sm:$0xff]
    %v463 = vld [vmem:[%s5 + $0x18] sm:$0xff]
    %v464 = vld [vmem:[%s5 + $0x20] sm:$0xff]
    %v465 = vld [vmem:[%s5 + $0x28] sm:$0xff]
    %v466 = vld [vmem:[%s5 + $0x30] sm:$0xff]
    %v467 = vld [vmem:[%s5 + $0x38] sm:$0xff]
    %v468 = vld [vmem:[%s5 + $0x40] sm:$0xff]
    %v469 = vld [vmem:[%s5 + $0x48] sm:$0xff]
    %v470 = vld [vmem:[%s5 + $0x50] sm:$0xff]
    %v471 = vld [vmem:[%s5 + $0x58] sm:$0xff]
    %v472 = vld [vmem:[%s5 + $0x60] sm:$0xff]
    %v473 = vld [vmem:[%s5 + $0x68] sm:$0xff]
    %v474 = vld [vmem:[%s5 + $0x70] sm:$0xff]
    %v475 = vld [vmem:[%s5 + $0x78] sm:$0xff]
    %v476 = vld [vmem:[%s5 + $0x80] sm:$0xff]
    %v477 = vld [vmem:[%s5 + $0x88] sm:$0xff]
    %v478 = vld [vmem:[%s5 + $0x90] sm:$0xff]
    %v479 = vld [vmem:[%s5 + $0x98] sm:$0xff]
    %v480 = vld [vmem:[%s5 + $0xa0] sm:$0xff]
    %v481 = vld [vmem:[%s5 + $0xa8] sm:$0xff]
    %v482 = vld [vmem:[%s5 + $0xb0] sm:$0xff]
    %v483 = vld [vmem:[%s5 + $0xb8] sm:$0xff]
    %v484 = vld [vmem:[%s5 + $0xc0] sm:$0xff]
    %v485 = vld [vmem:[%s5 + $0xc8] sm:$0xff]
    %v486 = vld [vmem:[%s5 + $0xd0] sm:$0xff]
    %v487 = vld [vmem:[%s5 + $0xd8] sm:$0xff]
    %v488 = vld [vmem:[%s5 + $0xe0] sm:$0xff]
    %v489 = vld [vmem:[%s5 + $0xe8] sm:$0xff]
    %v490 = vld [vmem:[%s5 + $0xf0] sm:$0xff]
    %v491 = vld [vmem:[%s5 + $0xf8] sm:$0xff]
    %v492 = vld [vmem:[%s5 + $0x100] sm:$0xff]
    %v493 = vld [vmem:[%s5 + $0x108] sm:$0xff]
    %v494 = vld [vmem:[%s5 + $0x110] sm:$0xff]
    %v495 = vld [vmem:[%s5 + $0x118] sm:$0xff]
    %v496 = vld [vmem:[%s5 + $0x120] sm:$0xff]
    %v497 = vld [vmem:[%s5 + $0x128] sm:$0xff]
    %v498 = vld [vmem:[%s5 + $0x130] sm:$0xff]
    %v499 = vld [vmem:[%s5 + $0x138] sm:$0xff]
    %v500 = vld [vmem:[%s5 + $0x140] sm:$0xff]
    %v501 = vld [vmem:[%s5 + $0x148] sm:$0xff]
    %v502 = vld [vmem:[%s5 + $0x150] sm:$0xff]
    %v503 = vld [vmem:[%s5 + $0x158] sm:$0xff]
    %v504 = vld [vmem:[%s5 + $0x160] sm:$0xff]
    %v505 = vld [vmem:[%s5 + $0x168] sm:$0xff]
    %v506 = vld [vmem:[%s5 + $0x170] sm:$0xff]
    %v507 = vld [vmem:[%s5 + $0x178] sm:$0xff]
    %v508 = vld [vmem:[%s6] sm:$0x1]
    %v510 = vperm.slane %v508, 0
    %512 = vmatpush.msra.mxu0 %v475
    %513 = vmatpush.msra.mxu0 %v474
    %514 = vmatpush.msra.mxu0 %v473
    %515 = vmatpush.msra.mxu0 %v472
    %516 = vmatpush.msra.mxu0 %v471
    %517 = vmatpush.msra.mxu0 %v470
    %518 = vmatpush.msra.mxu0 %v469
    %519 = vmatpush.msra.mxu0 %v468
    %520 = vmatpush.msra.mxu0 %v467
    %521 = vmatpush.msra.mxu0 %v466
    %522 = vmatpush.msra.mxu0 %v465
    %523 = vmatpush.msra.mxu0 %v464
    %524 = vmatpush.msra.mxu0 %v463
    %525 = vmatpush.msra.mxu0 %v462
    %526 = vmatpush.msra.mxu0 %v461
    %527 = vmatpush.msra.mxu0 %v460
    %528 = vmatmul.f32.gmra.mxu0 %v457
    %v529 = vpop.f32.mrf.mxu0
    %v530 = vadd.f32 %v510, %v529
    %531 = vdwg.mxu0
    %532 = vmatpush.msra.mxu0 %v491
    %533 = vmatpush.msra.mxu0 %v490
    %534 = vmatpush.msra.mxu0 %v489
    %535 = vmatpush.msra.mxu0 %v488
    %536 = vmatpush.msra.mxu0 %v487
    %537 = vmatpush.msra.mxu0 %v486
    %538 = vmatpush.msra.mxu0 %v485
    %539 = vmatpush.msra.mxu0 %v484
    %540 = vmatpush.msra.mxu0 %v483
    %541 = vmatpush.msra.mxu0 %v482
    %542 = vmatpush.msra.mxu0 %v481
    %543 = vmatpush.msra.mxu0 %v480
    %544 = vmatpush.msra.mxu0 %v479
    %545 = vmatpush.msra.mxu0 %v478
    %546 = vmatpush.msra.mxu0 %v477
    %547 = vmatpush.msra.mxu0 %v476
    %548 = vmatmul.f32.gmra.mxu0 %v458
    %v549 = vpop.f32.mrf.mxu0
    %v550 = vadd.f32 %v530, %v549
    %551 = vdwg.mxu0
    %552 = vmatpush.msra.mxu0 %v507
    %553 = vmatpush.msra.mxu0 %v506
    %554 = vmatpush.msra.mxu0 %v505
    %555 = vmatpush.msra.mxu0 %v504
    %556 = vmatpush.msra.mxu0 %v503
    %557 = vmatpush.msra.mxu0 %v502
    %558 = vmatpush.msra.mxu0 %v501
    %559 = vmatpush.msra.mxu0 %v500
    %560 = vmatpush.msra.mxu0 %v499
    %561 = vmatpush.msra.mxu0 %v498
    %562 = vmatpush.msra.mxu0 %v497
    %563 = vmatpush.msra.mxu0 %v496
    %564 = vmatpush.msra.mxu0 %v495
    %565 = vmatpush.msra.mxu0 %v494
    %566 = vmatpush.msra.mxu0 %v493
    %567 = vmatpush.msra.mxu0 %v492
    %568 = vmatmul.f32.gmra.mxu0 %v459
    %v569 = vpop.f32.mrf.mxu0
    %v570 = vadd.f32 %v550, %v569
    %571 = vdwg.mxu0
    %vm572 = vcmask 97280
    %573 = vst.msk [vmem:[#allocation5] sm:$0xff] %vm572, %v570
    // Predicated region
    $region34: #{tpu_custom_call.1} parent=1 // pred_check
      _
    $region35: #{tpu_custom_call.1} parent=1 // pred_check_branch
      %575 = sbr.rel (0) target = $region37
    $region36: #{tpu_custom_call.1} parent=1 // pred_region
      %577 = vsyncadd [#allocation4], 0
      %s579 = sshll.u32 [#allocation5], 4
      %s580 = int_to_ptr.vmem [resolvable:$true] %s579
      %s581 = sshll.u32 %s7, 4
      %s582 = int_to_ptr.hbm [resolvable:$true] %s581
      %584 = dma.vmem_to_hbm [thread:$0]  %s580, 128, %s582, [#allocation4]
    $region37: #{tpu_custom_call.1} parent=1 // pred_fallthru
      _
    // Predicated region
    $region38: #{tpu_custom_call.1} parent=1 // pred_check
      _
    $region39: #{tpu_custom_call.1} parent=1 // pred_check_branch
      %586 = sbr.rel (0) target = $region41
    $region40: #{tpu_custom_call.1} parent=1 // pred_region
      %588 = dma.done [#allocation4], 128
    $region41: #{tpu_custom_call.1} parent=1 // pred_fallthru
      _
    %589 = vsyncpa [#allocation3], 1
    %590 = vsyncpa [#allocation4], 1

</llo_original>
